<compile_context>
chip_gen: v7x
topology: tpu7x:2x2x1
jax: 0.10.0
libtpu: 0.0.40
codegen_flags: <defaults>
</compile_context>

<pallas_src>
import jax
import jax.numpy as jnp
from jax import lax
from jax.experimental import pallas as pl
from jax.experimental.pallas import tpu as pltpu


# ---------------------------------------------------------------------------
# Kernel
# ---------------------------------------------------------------------------
def _glca_apply_kernel(a_ref, x_ref, o_ref):
    """att = A_bd @ X (block-diag per-sample attention), out = X * att."""
    x = x_ref[...]                                  # (R, T), I/O dtype
    R = x.shape[0]
    if R <= 8:
        # Degenerate tiny case (N*C <= 8): R broadcast-FMAs on the VPU; an
        # 8x8 MXU matmul would be all padding.  Compute in f32 (v5e has no
        # bf16 VPU).
        a = a_ref[...].astype(jnp.float32)
        xf = x.astype(jnp.float32)
        att = a[:, 0:1] * xf[0:1, :]
        for k in range(1, R):
            att = att + a[:, k:k + 1] * xf[k:k + 1, :]
    else:
        # MXU path: operands stay in the I/O dtype (bf16 in -> bf16 operands,
        # 2-3x MXU throughput vs f32 passes), f32 accumulation.
        att = jnp.dot(a_ref[...], x, preferred_element_type=jnp.float32)
    o_ref[...] = (x.astype(jnp.float32) * att).astype(o_ref.dtype)


# ---------------------------------------------------------------------------
# Prelude (tiny, hoisted to plain JAX): GAP -> conv_q -> sigmoid -> q q^T
# -> flattened C*C softmax.  Output A is (N, C, C) f32.
# ---------------------------------------------------------------------------
def _attention_matrix(x, conv_q_w, conv_q_b, kernel_size):
    N, C = x.shape[0], x.shape[1]
    pad = (kernel_size - 1) // 2
    g = jnp.mean(x.astype(jnp.float32), axis=(2, 3))                   # GAP -> (N, C)
    w = conv_q_w.reshape(kernel_size).astype(jnp.float32)
    gp = jnp.pad(g, ((0, 0), (pad, pad)))
    q = jnp.zeros((N, C), jnp.float32)
    for t in range(kernel_size):                                       # conv1d = K shifted FMAs
        q = q + w[t] * gp[:, t:t + C]
    q = jax.nn.sigmoid(q + conv_q_b.reshape(()).astype(jnp.float32))   # (N, C)
    S = q[:, :, None] * q[:, None, :]                                  # key @ query == q q^T
    A = jax.nn.softmax(S.reshape(N, -1), axis=-1).reshape(N, C, C)     # flattened C*C softmax
    return A


def _block_diag(A4):
    """(G, nb, C, C) per-sample matrices -> (G, nb*C, nb*C) block-diagonal."""
    G, nb, C, _ = A4.shape
    eye = jnp.eye(nb, dtype=A4.dtype)
    Abd = A4[:, :, :, None, :] * eye[None, :, None, :, None]           # (G, nb, C, nb, C)
    return Abd.reshape(G, nb * C, nb * C)


# ---------------------------------------------------------------------------
# Tiling / VMEM budgeting
# ---------------------------------------------------------------------------
def _vmem_budget():
    """(vmem_limit_bytes, working-set budget) derived from the physical VMEM."""
    phys = 64 << 20                     # conservative default (v7x per-TC VMEM)
    try:
        info = pltpu.get_tpu_info()
        phys = int(getattr(info, "vmem_capacity_bytes", phys)) or phys
    except Exception:
        pass
    vmem_limit = (phys * 3) // 4        # 48 MiB on v7x, 96 MiB on v5e/v6e
    budget = (vmem_limit * 4) // 5      # leave headroom for Mosaic internal scratch
    return int(vmem_limit), int(budget)


def _pick_tiling(N, C, HW, x_itemsize, a_itemsize, vmem_budget):
    """Choose (samples per block nb, HW tile t_hw).

    The budget covers the full per-step working set: double-buffered x, out
    and A blocks plus the in-kernel f32 accumulator / upcast temporaries.
    """
    sub = 16 if x_itemsize < 4 else 8          # sublane granule (bf16 / f32)
    full_rows = N * C

    # --- samples per block: R = nb*C must be a multiple of `sub` (ideally) /
    # 8 (fallback), or the full stacked dim (always legal with nb = N). ---
    divisors = [d for d in range(1, N + 1) if N % d == 0]
    legal = [d for d in divisors if (d * C) % sub == 0 or d * C == full_rows]
    if not legal:
        legal = [d for d in divisors if (d * C) % 8 == 0 or d * C == full_rows]
    if not legal:
        legal = [N]

    x_tile_target = max(256 * 1024, vmem_budget // 8)
    sample_bytes = C * HW * x_itemsize
    want_nb = max(1, x_tile_target // max(sample_bytes, 1))   # amortize per-step overhead
    want_nb = min(want_nb, max(1, 256 // max(C, 1)))          # cap R: block-diag MXU waste + A size
    want_nb = min(want_nb, max(1, N // 8))                    # keep >= ~8 sample blocks when N allows
    nb = min(legal, key=lambda d: (abs(d - want_nb), -d))     # closest legal divisor of N
    R = nb * C
    G = N // nb

    # --- HW tile: lane-dense, sized so the whole working set fits the budget ---
    a_bytes = 2 * R * R * a_itemsize                          # double-buffered A block
    per_lane = R * (4 * x_itemsize + 2 * 4)                   # 2x(x) + 2x(out) bufs + ~2 f32 temps
    t_hw = max(128, int(max(vmem_budget - a_bytes, 0) // max(per_lane, 1)) // 128 * 128)
    if t_hw >= HW:
        t_hw = HW                                             # full extent (legal even if not %128)
    # Keep >= ~8 grid steps for pipelining / megacore / dual-TC sharding, but
    # never shrink below the ~512-lane knee where per-step overhead dominates.
    while HW > 512 and t_hw > 512 and G * ((HW + t_hw - 1) // t_hw) < 8:
        t_hw = max(512, ((t_hw // 2) // 128) * 128)
    return nb, t_hw


# ---------------------------------------------------------------------------
# Wrapper
# ---------------------------------------------------------------------------
def global_channel_attention(x, conv_q_w, conv_q_b, kernel_size):
    """x: (N, C, H, W) NCHW (f32 or bf16).  conv_q_w: (1, 1, K), conv_q_b: (1,)."""
    assert kernel_size % 2 == 1, "Kernel size must be odd"
    N, C, H, W = x.shape
    HW = H * W

    # Prelude hoisted out of the kernel (O(N*C) work; A is (N, C, C) f32).
    # TODO(synk): when a whole sample fits VMEM the GAP/conv_q/softmax prelude
    # could be fused into the kernel to cut HBM traffic from 3 to 2 passes over
    # x; kept hoisted here for simplicity and generality over large HW.
    A = _attention_matrix(x, conv_q_w, conv_q_b, kernel_size)
    # Reference applies A^T (att = A^T @ X).  A is exactly symmetric here, but
    # transpose explicitly so the kernel never relies on that invariant.
    A = jnp.swapaxes(A, 1, 2)

    a_dtype = jnp.bfloat16 if x.dtype == jnp.bfloat16 else jnp.float32
    vmem_limit, vmem_budget = _vmem_budget()
    nb, t_hw = _pick_tiling(N, C, HW, jnp.dtype(x.dtype).itemsize,
                            jnp.dtype(a_dtype).itemsize, vmem_budget)
    assert N % nb == 0
    G = N // nb
    R = nb * C

    # Block-diagonal per-sample-group attention (bf16 operands for bf16 I/O).
    A_bd = A if nb == 1 else _block_diag(A.reshape(G, nb, C, C))
    A_bd = A_bd.astype(a_dtype)                               # (G, R, R)

    x2 = x.reshape(N * C, HW)                                 # free reshape; sublane-dense rows

    out = pl.pallas_call(
        _glca_apply_kernel,
        out_shape=jax.ShapeDtypeStruct((N * C, HW), x.dtype),
        grid_spec=pltpu.PrefetchScalarGridSpec(
            num_scalar_prefetch=0,
            grid=(G, pl.cdiv(HW, t_hw)),
            in_specs=[
                # A: constant block index along the HW axis -> fetched once per
                # sample group and kept VMEM-resident across the HW sweep.
                pl.BlockSpec((None, R, R), lambda g, h: (g, 0, 0)),
                # X: streamed lane-dense HW tiles of the stacked (N*C, HW) array.
                pl.BlockSpec((R, t_hw), lambda g, h: (g, h)),
            ],
            out_specs=pl.BlockSpec((R, t_hw), lambda g, h: (g, h)),
        ),
        # No cross-step accumulation -> both axes independent (megacore / dual-TC).
        compiler_params=pltpu.CompilerParams(
            dimension_semantics=("parallel", "parallel"),
            vmem_limit_bytes=vmem_limit,
        ),
    )(A_bd, x2)
    return out.reshape(N, C, H, W)


# ---------------------------------------------------------------------------
# Pure-JAX reference matching the PyTorch forward exactly.
# ---------------------------------------------------------------------------
def _ref_forward(x, conv_q_w, conv_q_b, K):
    N, C, H, W = x.shape
    pad = (K - 1) // 2
    g = x.mean(axis=(2, 3))                                       # GAP -> (N, C)
    gp = jnp.pad(g, ((0, 0), (pad, pad)))
    w1 = conv_q_w.reshape(K)
    q = jnp.stack([(gp[:, c:c + K] * w1).sum(-1) for c in range(C)], axis=-1)
    q = jax.nn.sigmoid(q + conv_q_b.reshape(()))                  # (N, C)
    S = q[:, :, None] * q[:, None, :]                             # key @ query
    Amat = jax.nn.softmax(S.reshape(N, -1), axis=-1).reshape(N, C, C)
    value = x.transpose(0, 2, 3, 1).reshape(N, H * W, C)
    att = jnp.einsum('npc,nck->npk', value, Amat,
                     precision=lax.Precision.HIGHEST)
    att = att.transpose(0, 2, 1).reshape(N, C, H, W)
    return x * att


if __name__ == "__main__":
    key = jax.random.PRNGKey(0)
    kx, kw, kb, kx2, kw2, kb2 = jax.random.split(key, 6)

    # ---- spec config: feature_map_size = 16, kernel_size = 3 ----
    N, C, H, W = 2, 4, 16, 16
    K = 3
    x = jax.random.normal(kx, (N, C, H, W), dtype=jnp.float32)
    conv_q_w = 0.5 * jax.random.normal(kw, (1, 1, K), dtype=jnp.float32)
    conv_q_b = 0.1 * jax.random.normal(kb, (1,), dtype=jnp.float32)

    # f32 path (tiny-R unrolled path): must match the reference tightly.
    out = jax.block_until_ready(global_channel_attention(x, conv_q_w, conv_q_b, K))
    ref = _ref_forward(x, conv_q_w, conv_q_b, K)
    assert out.shape == (N, C, H, W)
    assert jnp.allclose(out, ref, atol=1e-5, rtol=1e-5), float(jnp.max(jnp.abs(out - ref)))

    # bf16 I/O path; compute / accumulation stays f32 in-kernel.
    x_bf = x.astype(jnp.bfloat16)
    out_bf = jax.block_until_ready(global_channel_attention(x_bf, conv_q_w, conv_q_b, K))
    ref_bf = _ref_forward(x_bf.astype(jnp.float32), conv_q_w, conv_q_b, K)
    assert out_bf.dtype == jnp.bfloat16
    assert jnp.allclose(out_bf.astype(jnp.float32), ref_bf, atol=2e-2, rtol=2e-2)

    # ---- slightly larger config exercising the MXU path and a multi-step grid ----
    N2, C2, H2, W2, K2 = 4, 32, 32, 32, 5
    x2 = jax.random.normal(kx2, (N2, C2, H2, W2), dtype=jnp.float32)
    w2 = 0.5 * jax.random.normal(kw2, (1, 1, K2), dtype=jnp.float32)
    b2 = 0.1 * jax.random.normal(kb2, (1,), dtype=jnp.float32)

    out2 = jax.block_until_ready(global_channel_attention(x2, w2, b2, K2))
    ref2 = _ref_forward(x2, w2, b2, K2)
    assert jnp.allclose(out2, ref2, atol=1e-5, rtol=1e-5), float(jnp.max(jnp.abs(out2 - ref2)))

    # Same config, bf16 operands fed straight to the MXU (f32 accumulation).
    x2_bf = x2.astype(jnp.bfloat16)
    out2_bf = jax.block_until_ready(global_channel_attention(x2_bf, w2, b2, K2))
    ref2_bf = _ref_forward(x2_bf.astype(jnp.float32), w2, b2, K2)
    assert out2_bf.dtype == jnp.bfloat16
    assert jnp.allclose(out2_bf.astype(jnp.float32), ref2_bf, atol=2e-2, rtol=2e-2)

    print("KERNEL_OK")
</pallas_src>

<mosaic_0001>
module attributes {stable_mosaic.version = 11 : i64} {
  func.func @_glca_apply_kernel(%arg0: i32, %arg1: i32, %arg2: memref<1x8x8xf32, #tpu.memory_space<vmem>>, %arg3: memref<8x256xf32, #tpu.memory_space<vmem>>, %arg4: memref<8x256xf32, #tpu.memory_space<vmem>>) attributes {dimension_semantics = [#tpu.dimension_semantics<parallel>, #tpu.dimension_semantics<parallel>], iteration_bounds = array<i64: 1, 1>, scalar_prefetch = 0 : i64, scratch_operands = 0 : i64, tpu.core_type = #tpu.core_type<tc>, window_params = [{transform_indices = @transform_0, window_bounds = array<i64: 1, 8, 8>}, {transform_indices = @transform_1, window_bounds = array<i64: 8, 256>}, {transform_indices = @transform_2, window_bounds = array<i64: 8, 256>}]} {
    %c0 = arith.constant 0 : index
    %c0_0 = arith.constant 0 : index
    %0 = vector.load %arg3[%c0, %c0_0] : memref<8x256xf32, #tpu.memory_space<vmem>>, vector<8x256xf32>
    %c0_1 = arith.constant 0 : index
    %c0_2 = arith.constant 0 : index
    %c0_3 = arith.constant 0 : index
    %1 = vector.load %arg2[%c0_1, %c0_2, %c0_3] : memref<1x8x8xf32, #tpu.memory_space<vmem>>, vector<1x8x8xf32>
    %2 = vector.shape_cast %1 : vector<1x8x8xf32> to vector<8x8xf32>
    %3 = vector.extract_strided_slice %2 {offsets = [0, 0], sizes = [8, 1], strides = [1, 1]} : vector<8x8xf32> to vector<8x1xf32>
    %4 = vector.extract_strided_slice %0 {offsets = [0, 0], sizes = [1, 256], strides = [1, 1]} : vector<8x256xf32> to vector<1x256xf32>
    %5 = vector.broadcast %3 : vector<8x1xf32> to vector<8x256xf32>
    %6 = vector.broadcast %4 : vector<1x256xf32> to vector<8x256xf32>
    %7 = arith.mulf %5, %6 : vector<8x256xf32>
    %8 = vector.extract_strided_slice %2 {offsets = [0, 1], sizes = [8, 1], strides = [1, 1]} : vector<8x8xf32> to vector<8x1xf32>
    %9 = vector.extract_strided_slice %0 {offsets = [1, 0], sizes = [1, 256], strides = [1, 1]} : vector<8x256xf32> to vector<1x256xf32>
    %10 = vector.broadcast %8 : vector<8x1xf32> to vector<8x256xf32>
    %11 = vector.broadcast %9 : vector<1x256xf32> to vector<8x256xf32>
    %12 = arith.mulf %10, %11 : vector<8x256xf32>
    %13 = arith.addf %7, %12 : vector<8x256xf32>
    %14 = vector.extract_strided_slice %2 {offsets = [0, 2], sizes = [8, 1], strides = [1, 1]} : vector<8x8xf32> to vector<8x1xf32>
    %15 = vector.extract_strided_slice %0 {offsets = [2, 0], sizes = [1, 256], strides = [1, 1]} : vector<8x256xf32> to vector<1x256xf32>
    %16 = vector.broadcast %14 : vector<8x1xf32> to vector<8x256xf32>
    %17 = vector.broadcast %15 : vector<1x256xf32> to vector<8x256xf32>
    %18 = arith.mulf %16, %17 : vector<8x256xf32>
    %19 = arith.addf %13, %18 : vector<8x256xf32>
    %20 = vector.extract_strided_slice %2 {offsets = [0, 3], sizes = [8, 1], strides = [1, 1]} : vector<8x8xf32> to vector<8x1xf32>
    %21 = vector.extract_strided_slice %0 {offsets = [3, 0], sizes = [1, 256], strides = [1, 1]} : vector<8x256xf32> to vector<1x256xf32>
    %22 = vector.broadcast %20 : vector<8x1xf32> to vector<8x256xf32>
    %23 = vector.broadcast %21 : vector<1x256xf32> to vector<8x256xf32>
    %24 = arith.mulf %22, %23 : vector<8x256xf32>
    %25 = arith.addf %19, %24 : vector<8x256xf32>
    %26 = vector.extract_strided_slice %2 {offsets = [0, 4], sizes = [8, 1], strides = [1, 1]} : vector<8x8xf32> to vector<8x1xf32>
    %27 = vector.extract_strided_slice %0 {offsets = [4, 0], sizes = [1, 256], strides = [1, 1]} : vector<8x256xf32> to vector<1x256xf32>
    %28 = vector.broadcast %26 : vector<8x1xf32> to vector<8x256xf32>
    %29 = vector.broadcast %27 : vector<1x256xf32> to vector<8x256xf32>
    %30 = arith.mulf %28, %29 : vector<8x256xf32>
    %31 = arith.addf %25, %30 : vector<8x256xf32>
    %32 = vector.extract_strided_slice %2 {offsets = [0, 5], sizes = [8, 1], strides = [1, 1]} : vector<8x8xf32> to vector<8x1xf32>
    %33 = vector.extract_strided_slice %0 {offsets = [5, 0], sizes = [1, 256], strides = [1, 1]} : vector<8x256xf32> to vector<1x256xf32>
    %34 = vector.broadcast %32 : vector<8x1xf32> to vector<8x256xf32>
    %35 = vector.broadcast %33 : vector<1x256xf32> to vector<8x256xf32>
    %36 = arith.mulf %34, %35 : vector<8x256xf32>
    %37 = arith.addf %31, %36 : vector<8x256xf32>
    %38 = vector.extract_strided_slice %2 {offsets = [0, 6], sizes = [8, 1], strides = [1, 1]} : vector<8x8xf32> to vector<8x1xf32>
    %39 = vector.extract_strided_slice %0 {offsets = [6, 0], sizes = [1, 256], strides = [1, 1]} : vector<8x256xf32> to vector<1x256xf32>
    %40 = vector.broadcast %38 : vector<8x1xf32> to vector<8x256xf32>
    %41 = vector.broadcast %39 : vector<1x256xf32> to vector<8x256xf32>
    %42 = arith.mulf %40, %41 : vector<8x256xf32>
    %43 = arith.addf %37, %42 : vector<8x256xf32>
    %44 = vector.extract_strided_slice %2 {offsets = [0, 7], sizes = [8, 1], strides = [1, 1]} : vector<8x8xf32> to vector<8x1xf32>
    %45 = vector.extract_strided_slice %0 {offsets = [7, 0], sizes = [1, 256], strides = [1, 1]} : vector<8x256xf32> to vector<1x256xf32>
    %46 = vector.broadcast %44 : vector<8x1xf32> to vector<8x256xf32>
    %47 = vector.broadcast %45 : vector<1x256xf32> to vector<8x256xf32>
    %48 = arith.mulf %46, %47 : vector<8x256xf32>
    %49 = arith.addf %43, %48 : vector<8x256xf32>
    %50 = arith.mulf %0, %49 : vector<8x256xf32>
    %c0_4 = arith.constant 0 : index
    %c0_5 = arith.constant 0 : index
    %51 = vector.load %arg4[%c0_4, %c0_5] : memref<8x256xf32, #tpu.memory_space<vmem>>, vector<8x256xf32>
    tpu.vector_store %arg4[%c0_4, %c0_5], %50 {strides = array<i32>} : memref<8x256xf32, #tpu.memory_space<vmem>>, vector<8x256xf32>,
    return
  }
  func.func @transform_0(%arg0: i32, %arg1: i32) -> (i32, i32, i32) {
    %c0_i32 = arith.constant 0 : i32
    %c0_i32_0 = arith.constant 0 : i32
    %c0_i32_1 = arith.constant 0 : i32
    return %arg0, %c0_i32, %c0_i32_0 : i32, i32, i32
  }
  func.func @transform_1(%arg0: i32, %arg1: i32) -> (i32, i32) {
    %c0_i32 = arith.constant 0 : i32
    return %arg0, %arg1 : i32, i32
  }
  func.func @transform_2(%arg0: i32, %arg1: i32) -> (i32, i32) {
    %c0_i32 = arith.constant 0 : i32
    return %arg0, %arg1 : i32, i32
  }
}

</mosaic_0001>

<llo_original>
// kernel: tpu_custom_call.1
$region0: #{tpu_custom_call.1}
  #allocation0 [shape = 'u32[]', space=smem, size = 0x4, offset = 0x4, fixed_abs, tag = 'smem constant byte address 0x4 - core index']
  #allocation1 [shape = 'u32[144,128]{1,0:T(1,128)}', space=vmem, size = 0x12000, scoped, tag = 'internal scratch']
  %s0 = inlined_call_operand.hbm [shape: f32[1,8,8], index: 0, kind: input, shape index: {}]
  %s1 = inlined_call_operand.hbm [shape: f32[8,256], index: 1, kind: input, shape index: {}]
  %s2 = inlined_call_operand.hbm [shape: f32[8,256], index: 2, kind: output, shape index: {}]
  %s3 = sld [smem:[#allocation0]]
  $region26: #{tpu_custom_call.1} parent=0
    _
  %s5 = ssub.s32 1, %s3
  %s6 = scalar_select 0, %s5, %s3
  $region1: #{tpu_custom_call.1} parent=0
    #allocation2 [shape = 'u8[4096]{0}', space=vmem, size = 0x1000, scoped, tag = 'input window, operand 0, single buffered']
    #allocation3 [shape = 's32[1]{0}', space=sflag, size = 0x4, scoped, tag = 'scoped memory for tpu_custom_call.1']
    #allocation4 [shape = 's32[1]{0}', space=sflag, size = 0x4, scoped, tag = 'scoped memory for tpu_custom_call.1']
    #allocation5 [shape = 'u8[8192]{0}', space=vmem, size = 0x2000, scoped, tag = 'input window, operand 1, single buffered']
    #allocation6 [shape = 's32[1]{0}', space=sflag, size = 0x4, scoped, tag = 'scoped memory for tpu_custom_call.1']
    #allocation7 [shape = 'u8[8192]{0}', space=vmem, size = 0x2000, scoped, tag = 'output window, operand 0, single buffered']
    %7 = vsyncpa [#allocation3], 0
    %8 = vsyncpa [#allocation6], 0
    %9 = vsyncpa [#allocation4], 0
    // Predicated region
    $region2: #{tpu_custom_call.1} parent=1 // pred_check
      _
    $region3: #{tpu_custom_call.1} parent=1 // pred_check_branch
      %11 = sbr.rel (0) target = $region5
    $region4: #{tpu_custom_call.1} parent=1 // pred_region
      %s13 = ssub.s32 128, 128
      %14 = vsyncadd [#allocation3], %s13
      %s16 = sshll.u32 [#allocation2], 4
      %s17 = int_to_ptr.vmem [resolvable:$true] %s16
      %19 = dma.hbm_to_vmem [thread:$0]  %s0, 128, %s17, [#allocation3]
    $region5: #{tpu_custom_call.1} parent=1 // pred_fallthru
      _
    // Predicated region
    $region6: #{tpu_custom_call.1} parent=1 // pred_check
      _
    $region7: #{tpu_custom_call.1} parent=1 // pred_check_branch
      %21 = sbr.rel (0) target = $region9
    $region8: #{tpu_custom_call.1} parent=1 // pred_region
      %s23 = ssub.s32 256, 256
      %24 = vsyncadd [#allocation6], %s23
      %s26 = sshll.u32 [#allocation5], 4
      %s27 = int_to_ptr.vmem [resolvable:$true] %s26
      %29 = dma.hbm_to_vmem [thread:$0]  %s1, 256, %s27, [#allocation6]
    $region9: #{tpu_custom_call.1} parent=1 // pred_fallthru
      _
    // Predicated region
    $region10: #{tpu_custom_call.1} parent=1 // pred_check
      _
    $region11: #{tpu_custom_call.1} parent=1 // pred_check_branch
      %31 = sbr.rel (0) target = $region13
    $region12: #{tpu_custom_call.1} parent=1 // pred_region
      %32 = dma.done [#allocation3], 128
    $region13: #{tpu_custom_call.1} parent=1 // pred_fallthru
      _
    // Predicated region
    $region14: #{tpu_custom_call.1} parent=1 // pred_check
      _
    $region15: #{tpu_custom_call.1} parent=1 // pred_check_branch
      %34 = sbr.rel (0) target = $region17
    $region16: #{tpu_custom_call.1} parent=1 // pred_region
      %35 = dma.done [#allocation6], 256
    $region17: #{tpu_custom_call.1} parent=1 // pred_fallthru
      _
    %v36 = vld [vmem:[#allocation5] sm:$0xff]
    %v37 = vld [vmem:[#allocation5 + $0x8] sm:$0xff]
    %v38 = vld [vmem:[#allocation2] sm:$0xff]
    %40 = vset.pattern.permute.xlu0 0
    %41 = vperm.xlu0 %40, %v38
    %v42 = vpop.permute.xlu0 %41
    %v44 = vlaneseq
    %v45 = vshrl.u32 %v44, 7
    %v46 = vsub.s32 0, %v45
    %v47 = vrot.slane %v36, %v46
    %v48 = vlaneseq
    %v49 = vshrl.u32 %v48, 7
    %v50 = vsub.s32 0, %v49
    %v51 = vrot.slane %v37, %v50
    %v52 = vmul.f32 %v42, %v47
    %v53 = vmul.f32 %v42, %v51
    %54 = vset.pattern.permute.xlu0 1
    %55 = vperm.xlu0 %54, %v38
    %v56 = vpop.permute.xlu0 %55
    %v58 = vlaneseq
    %v59 = vshrl.u32 %v58, 7
    %v60 = vsub.s32 1, %v59
    %v61 = vrot.slane %v36, %v60
    %v62 = vlaneseq
    %v63 = vshrl.u32 %v62, 7
    %v64 = vsub.s32 1, %v63
    %v65 = vrot.slane %v37, %v64
    %v66 = vmul.f32 %v56, %v61
    %v67 = vmul.f32 %v56, %v65
    %v68 = vadd.f32 %v52, %v66
    %v69 = vadd.f32 %v53, %v67
    %70 = vset.pattern.permute.xlu0 2
    %71 = vperm.xlu0 %70, %v38
    %v72 = vpop.permute.xlu0 %71
    %v74 = vlaneseq
    %v75 = vshrl.u32 %v74, 7
    %v76 = vsub.s32 2, %v75
    %v77 = vrot.slane %v36, %v76
    %v78 = vlaneseq
    %v79 = vshrl.u32 %v78, 7
    %v80 = vsub.s32 2, %v79
    %v81 = vrot.slane %v37, %v80
    %v82 = vmul.f32 %v72, %v77
    %v83 = vmul.f32 %v72, %v81
    %v84 = vadd.f32 %v68, %v82
    %v85 = vadd.f32 %v69, %v83
    %86 = vset.pattern.permute.xlu0 3
    %87 = vperm.xlu0 %86, %v38
    %v88 = vpop.permute.xlu0 %87
    %v90 = vlaneseq
    %v91 = vshrl.u32 %v90, 7
    %v92 = vsub.s32 3, %v91
    %v93 = vrot.slane %v36, %v92
    %v94 = vlaneseq
    %v95 = vshrl.u32 %v94, 7
    %v96 = vsub.s32 3, %v95
    %v97 = vrot.slane %v37, %v96
    %v98 = vmul.f32 %v88, %v93
    %v99 = vmul.f32 %v88, %v97
    %v100 = vadd.f32 %v84, %v98
    %v101 = vadd.f32 %v85, %v99
    %102 = vset.pattern.permute.xlu0 4
    %103 = vperm.xlu0 %102, %v38
    %v104 = vpop.permute.xlu0 %103
    %v106 = vlaneseq
    %v107 = vshrl.u32 %v106, 7
    %v108 = vsub.s32 4, %v107
    %v109 = vrot.slane %v36, %v108
    %v110 = vlaneseq
    %v111 = vshrl.u32 %v110, 7
    %v112 = vsub.s32 4, %v111
    %v113 = vrot.slane %v37, %v112
    %v114 = vmul.f32 %v104, %v109
    %v115 = vmul.f32 %v104, %v113
    %v116 = vadd.f32 %v100, %v114
    %v117 = vadd.f32 %v101, %v115
    %118 = vset.pattern.permute.xlu0 5
    %119 = vperm.xlu0 %118, %v38
    %v120 = vpop.permute.xlu0 %119
    %v122 = vlaneseq
    %v123 = vshrl.u32 %v122, 7
    %v124 = vsub.s32 5, %v123
    %v125 = vrot.slane %v36, %v124
    %v126 = vlaneseq
    %v127 = vshrl.u32 %v126, 7
    %v128 = vsub.s32 5, %v127
    %v129 = vrot.slane %v37, %v128
    %v130 = vmul.f32 %v120, %v125
    %v131 = vmul.f32 %v120, %v129
    %v132 = vadd.f32 %v116, %v130
    %v133 = vadd.f32 %v117, %v131
    %134 = vset.pattern.permute.xlu0 6
    %135 = vperm.xlu0 %134, %v38
    %v136 = vpop.permute.xlu0 %135
    %v138 = vlaneseq
    %v139 = vshrl.u32 %v138, 7
    %v140 = vsub.s32 6, %v139
    %v141 = vrot.slane %v36, %v140
    %v142 = vlaneseq
    %v143 = vshrl.u32 %v142, 7
    %v144 = vsub.s32 6, %v143
    %v145 = vrot.slane %v37, %v144
    %v146 = vmul.f32 %v136, %v141
    %v147 = vmul.f32 %v136, %v145
    %v148 = vadd.f32 %v132, %v146
    %v149 = vadd.f32 %v133, %v147
    %150 = vset.pattern.permute.xlu0 7
    %151 = vperm.xlu0 %150, %v38
    %v152 = vpop.permute.xlu0 %151
    %v154 = vlaneseq
    %v155 = vshrl.u32 %v154, 7
    %v156 = vsub.s32 7, %v155
    %v157 = vrot.slane %v36, %v156
    %v158 = vlaneseq
    %v159 = vshrl.u32 %v158, 7
    %v160 = vsub.s32 7, %v159
    %v161 = vrot.slane %v37, %v160
    %v162 = vmul.f32 %v152, %v157
    %v163 = vmul.f32 %v152, %v161
    %v164 = vadd.f32 %v148, %v162
    %v165 = vadd.f32 %v149, %v163
    %v166 = vmul.f32 %v36, %v164
    %v167 = vmul.f32 %v37, %v165
    %168 = vst [vmem:[#allocation7] sm:$0xff] %v166
    %169 = vst [vmem:[#allocation7 + $0x8] sm:$0xff] %v167
    // Predicated region
    $region18: #{tpu_custom_call.1} parent=1 // pred_check
      _
    $region19: #{tpu_custom_call.1} parent=1 // pred_check_branch
      %171 = sbr.rel (0) target = $region21
    $region20: #{tpu_custom_call.1} parent=1 // pred_region
      %s173 = ssub.s32 256, 256
      %174 = vsyncadd [#allocation4], %s173
      %s176 = sshll.u32 [#allocation7], 4
      %s177 = int_to_ptr.vmem [resolvable:$true] %s176
      %179 = dma.vmem_to_hbm [thread:$0]  %s177, 256, %s2, [#allocation4]
    $region21: #{tpu_custom_call.1} parent=1 // pred_fallthru
      _
    // Predicated region
    $region22: #{tpu_custom_call.1} parent=1 // pred_check
      _
    $region23: #{tpu_custom_call.1} parent=1 // pred_check_branch
      %181 = sbr.rel (0) target = $region25
    $region24: #{tpu_custom_call.1} parent=1 // pred_region
      %182 = dma.done [#allocation4], 256
    $region25: #{tpu_custom_call.1} parent=1 // pred_fallthru
      _
    %183 = vsyncpa [#allocation3], 1
    %184 = vsyncpa [#allocation6], 1
    %185 = vsyncpa [#allocation4], 1

</llo_original>
